<compile_context>
chip_gen: v6e
topology: v6e:2x2x1
jax: 0.10.0
libtpu: 0.0.40
codegen_flags: <defaults>
</compile_context>

<pallas_src>
import jax
import jax.numpy as jnp
from jax import lax
from jax.experimental import pallas as pl
from jax.experimental.pallas import tpu as pltpu


def _round_up(n, m):
    return ((n + m - 1) // m) * m


def _gelu_exact(x):
    # PyTorch nn.GELU() default = exact erf formulation.
    return 0.5 * x * (1.0 + lax.erf(x * 0.7071067811865476))


def _softplus(x):
    # Numerically stable softplus: max(x, 0) + log1p(exp(-|x|)).
    return jnp.maximum(x, 0.0) + jnp.log1p(jnp.exp(-jnp.abs(x)))


def _fused_uncertainty_kernel(x_ref, w1_ref, b1_ref, w2_ref, b2_ref,
                              mean_ref, var_ref):
    """One batch tile of the fused mean/var 2-layer MLP."""
    x = x_ref[...]
    # Fused first layer: cols [0:hidden] = mean head, [hidden:2*hidden] = var head.
    h = jnp.dot(x, w1_ref[...], preferred_element_type=jnp.float32) + b1_ref[...]
    h = _gelu_exact(h)
    # Fused block-diagonal second layer.  The var head's columns start at the
    # 128-aligned offset O_align, so the two halves of y are static lane-block
    # slices: no cross-lane movement, no iota/select masking.
    y = (jnp.dot(h.astype(w2_ref.dtype), w2_ref[...],
                 preferred_element_type=jnp.float32) + b2_ref[...])
    half = y.shape[-1] // 2
    mean_ref[...] = y[:, :half].astype(mean_ref.dtype)
    # Softplus (EUP exp/log1p) only on the var lane block, not the whole slab.
    var_ref[...] = (_softplus(y[:, half:]) + 1e-6).astype(var_ref.dtype)


def _pick_batch_tile(B, D, H_pad, O2, itemsize, block_b, sublane, vmem_budget):
    """Batch tile TB: <= block_b, minimal padding, >= 4 tiles when the batch is
    large (v7x megacore), and within a conservative VMEM budget."""
    n_tiles = max(1, pl.cdiv(B, block_b))
    n_tiles = max(n_tiles, min(4, B // 128))          # keep tiles >= 128 rows
    tb = _round_up(pl.cdiv(B, n_tiles), sublane)

    weight_bytes = (D * H_pad + H_pad * O2) * itemsize + (H_pad + O2) * 4

    def stream_bytes(t):
        x_buf = 2 * t * D * itemsize                  # double-buffered x tile
        out_buf = 2 * 2 * t * (O2 // 2) * 4           # two f32 outputs, 2 bufs
        mid = t * (H_pad + O2) * 4                    # h and y f32 intermediates
        return x_buf + out_buf + mid

    while tb > sublane and weight_bytes + stream_bytes(tb) > vmem_budget:
        tb = max(sublane, _round_up(tb // 2, sublane))
    if tb >= B:
        tb = B                                        # single full-batch tile
    return tb


def reference_forward(x, p):
    """Pure-JAX reference (same math as the PyTorch module)."""
    def mlp(w1, b1, w2, b2):
        h = _gelu_exact(x @ w1 + b1)
        return h @ w2 + b2
    mean = mlp(p["w1m"], p["b1m"], p["w2m"], p["b2m"])
    var = jax.nn.softplus(mlp(p["w1v"], p["b1v"], p["w2v"], p["b2v"])) + 1e-6
    return mean, var


def uncertainty_forward(x, params, *, block_b=512, compute_dtype=jnp.bfloat16,
                        vmem_budget=40 * 1024 * 1024, xla_fallback_elems=0):
    """x: (B, D) float. params: dict of (in,out) weights and (1,out) biases.

    Returns (mean, var), each (B, O) float32.
    """
    B, D = x.shape
    hidden = params["w1m"].shape[1]
    O = params["w2m"].shape[1]

    # Optional small-problem escape hatch: for tiny B*D the fixed pallas_call /
    # per-step overhead dominates and plain XLA is faster.  Disabled by default
    # (threshold 0) so the Pallas path is always exercised unless callers opt in.
    if B * D < xla_fallback_elems:
        return reference_forward(x, params)

    cdt = jnp.dtype(compute_dtype)
    itemsize = cdt.itemsize
    sublane = 8 if itemsize == 4 else 16              # f32 -> 8 rows, bf16 -> 16
    # TODO(synk): fp8 weights on v7x (itemsize 1, sublane 32) are not wired up.

    H = 2 * hidden
    H_pad = _round_up(H, 128)                         # fused hidden width (lanes)
    O_al = _round_up(O, 128)                          # per-head lane-aligned width
    O2 = 2 * O_al

    f32 = jnp.float32
    # Fused first layer: W1 = [w1m || w1v], b1 = [b1m || b1v]; zero padding is
    # exact (padded cols feed GELU(0)=0 into zero rows of W2).
    w1 = jnp.zeros((D, H_pad), cdt)
    w1 = w1.at[:, :hidden].set(params["w1m"].astype(cdt))
    w1 = w1.at[:, hidden:H].set(params["w1v"].astype(cdt))
    b1 = jnp.zeros((1, H_pad), f32)
    b1 = b1.at[:, :hidden].set(params["b1m"].astype(f32))
    b1 = b1.at[:, hidden:H].set(params["b1v"].astype(f32))
    # Fused second layer: block-diagonal, var head at the 128-aligned offset O_al.
    w2 = jnp.zeros((H_pad, O2), cdt)
    w2 = w2.at[:hidden, :O].set(params["w2m"].astype(cdt))
    w2 = w2.at[hidden:H, O_al:O_al + O].set(params["w2v"].astype(cdt))
    b2 = jnp.zeros((1, O2), f32)
    b2 = b2.at[:, :O].set(params["b2m"].astype(f32))
    b2 = b2.at[:, O_al:O_al + O].set(params["b2v"].astype(f32))

    # x streams straight from HBM: no padded host-side copy. (astype is a no-op
    # when the caller already supplies compute_dtype.)
    x_c = x.astype(cdt)

    TB = _pick_batch_tile(B, D, H_pad, O2, itemsize, block_b, sublane, vmem_budget)
    grid = (pl.cdiv(B, TB),)

    weight_bytes = (w1.size + w2.size) * itemsize + (b1.size + b2.size) * 4
    stream_bytes = 2 * TB * D * itemsize + 4 * TB * O_al * 4
    scratch_bytes = TB * (H_pad + O2) * 4
    vmem_limit = int(min(64 * 1024 * 1024,
                         max(8 * 1024 * 1024,
                             2 * weight_bytes + stream_bytes + 2 * scratch_bytes)))

    def build(weight_mode):
        def wspec(shape):
            if weight_mode is None:
                return pl.BlockSpec(shape, lambda i: (0, 0))
            return pl.BlockSpec(shape, lambda i: (0, 0), pipeline_mode=weight_mode)

        return pl.pallas_call(
            _fused_uncertainty_kernel,
            out_shape=(jax.ShapeDtypeStruct((B, O_al), f32),
                       jax.ShapeDtypeStruct((B, O_al), f32)),
            grid=grid,
            in_specs=[
                pl.BlockSpec((TB, D), lambda i: (i, 0)),  # streamed batch tiles
                wspec((D, H_pad)),                         # VMEM-resident weights
                wspec((1, H_pad)),
                wspec((H_pad, O2)),
                wspec((1, O2)),
            ],
            out_specs=(pl.BlockSpec((TB, O_al), lambda i: (i, 0)),
                       pl.BlockSpec((TB, O_al), lambda i: (i, 0))),
            compiler_params=pltpu.CompilerParams(
                # TODO(synk): confirm "parallel" shards batch tiles across both
                # v7x TensorCores; otherwise switch to pltpu.CORE_PARALLEL.
                dimension_semantics=("parallel",),
                vmem_limit_bytes=vmem_limit,
            ),
        )

    args = (x_c, w1, b1, w2, b2)
    try:
        # Single-buffer the constant-index weight operands (halves their VMEM).
        out_m, out_v = build(pl.Buffered(1))(*args)
    except Exception:
        # Fallback for jax versions where pipeline_mode=Buffered(1) is rejected.
        out_m, out_v = build(None)(*args)

    # TODO(synk): for very large D (fused W1 alone over the VMEM budget, e.g.
    # input_size >= 4096 f32 on v7x) add a K grid axis over D with an f32
    # accumulator scratch instead of keeping all of W1 resident.
    return out_m[:, :O], out_v[:, :O]


def init_params(key, input_size, output_size):
    hidden = input_size // 2
    ks = jax.random.split(key, 8)

    def linear(kw, kb, fan_in, fan_out):
        # Kaiming-uniform-ish deterministic init (like nn.Linear defaults).
        bound = 1.0 / jnp.sqrt(fan_in)
        w = jax.random.uniform(kw, (fan_in, fan_out), jnp.float32, -bound, bound)
        b = jax.random.uniform(kb, (1, fan_out), jnp.float32, -bound, bound)
        return w, b

    w1m, b1m = linear(ks[0], ks[1], input_size, hidden)
    w2m, b2m = linear(ks[2], ks[3], hidden, output_size)
    w1v, b1v = linear(ks[4], ks[5], input_size, hidden)
    w2v, b2v = linear(ks[6], ks[7], hidden, output_size)
    return dict(w1m=w1m, b1m=b1m, w2m=w2m, b2m=b2m,
                w1v=w1v, b1v=b1v, w2v=w2v, b2v=b2v)


if __name__ == "__main__":
    B, INPUT_SIZE, OUTPUT_SIZE = 8, 32, 16

    key = jax.random.PRNGKey(0)
    kx, kp = jax.random.split(key)
    x = jax.random.normal(kx, (B, INPUT_SIZE), jnp.float32)
    params = init_params(kp, INPUT_SIZE, OUTPUT_SIZE)

    mean_gold, var_gold = reference_forward(x, params)

    # f32 operand path: bit-tight against the reference formulation.
    mean32, var32 = uncertainty_forward(x, params, compute_dtype=jnp.float32)
    jax.block_until_ready((mean32, var32))
    assert mean32.shape == (B, OUTPUT_SIZE) and var32.shape == (B, OUTPUT_SIZE)
    assert jnp.allclose(mean32, mean_gold, atol=1e-5, rtol=1e-5)
    assert jnp.allclose(var32, var_gold, atol=1e-5, rtol=1e-5)
    assert bool(jnp.all(var32 > 0.0))

    # Default bf16 operand path (f32 MXU accumulation): looser tolerance.
    mean16, var16 = uncertainty_forward(x, params)
    jax.block_until_ready((mean16, var16))
    assert mean16.shape == (B, OUTPUT_SIZE) and var16.shape == (B, OUTPUT_SIZE)
    assert jnp.allclose(mean16, mean_gold, atol=5e-2, rtol=5e-2)
    assert jnp.allclose(var16, var_gold, atol=5e-2, rtol=5e-2)
    assert bool(jnp.all(var16 > 0.0))

    print("KERNEL_OK")
</pallas_src>

<mosaic_0001>
module attributes {stable_mosaic.version = 11 : i64} {
  func.func @_fused_uncertainty_kernel(%arg0: i32, %arg1: memref<8x32xf32, #tpu.memory_space<vmem>>, %arg2: memref<32x128xf32, #tpu.memory_space<vmem>>, %arg3: memref<1x128xf32, #tpu.memory_space<vmem>>, %arg4: memref<128x256xf32, #tpu.memory_space<vmem>>, %arg5: memref<1x256xf32, #tpu.memory_space<vmem>>, %arg6: memref<8x128xf32, #tpu.memory_space<vmem>>, %arg7: memref<8x128xf32, #tpu.memory_space<vmem>>) attributes {dimension_semantics = [#tpu.dimension_semantics<parallel>], iteration_bounds = array<i64: 1>, scalar_prefetch = 0 : i64, scratch_operands = 0 : i64, tpu.core_type = #tpu.core_type<tc>, window_params = [{transform_indices = @transform_0, window_bounds = array<i64: 8, 32>}, {pipeline_mode = #tpu.pipeline_mode<synchronous>, transform_indices = @transform_1, window_bounds = array<i64: 32, 128>}, {pipeline_mode = #tpu.pipeline_mode<synchronous>, transform_indices = @transform_2, window_bounds = array<i64: 1, 128>}, {pipeline_mode = #tpu.pipeline_mode<synchronous>, transform_indices = @transform_3, window_bounds = array<i64: 128, 256>}, {pipeline_mode = #tpu.pipeline_mode<synchronous>, transform_indices = @transform_4, window_bounds = array<i64: 1, 256>}, {transform_indices = @transform_5, window_bounds = array<i64: 8, 128>}, {transform_indices = @transform_6, window_bounds = array<i64: 8, 128>}]} {
    %c0 = arith.constant 0 : index
    %c0_0 = arith.constant 0 : index
    %0 = vector.load %arg1[%c0, %c0_0] : memref<8x32xf32, #tpu.memory_space<vmem>>, vector<8x32xf32>
    %c0_1 = arith.constant 0 : index
    %c0_2 = arith.constant 0 : index
    %1 = vector.load %arg2[%c0_1, %c0_2] : memref<32x128xf32, #tpu.memory_space<vmem>>, vector<32x128xf32>
    %cst = arith.constant dense<0.000000e+00> : vector<8x128xf32>
    %2 = tpu.matmul %0, %1, %cst {dimension_numbers = #tpu.dot_dimension_numbers<[1], [0], [0], [1], [0, 0, 1, 1], [], []>} : vector<8x32xf32>, vector<32x128xf32>, vector<8x128xf32> -> vector<8x128xf32>
    %c0_3 = arith.constant 0 : index
    %c0_4 = arith.constant 0 : index
    %3 = vector.load %arg3[%c0_3, %c0_4] : memref<1x128xf32, #tpu.memory_space<vmem>>, vector<1x128xf32>
    %4 = vector.broadcast %3 : vector<1x128xf32> to vector<8x128xf32>
    %5 = arith.addf %2, %4 : vector<8x128xf32>
    %cst_5 = arith.constant 5.000000e-01 : f32
    %6 = vector.broadcast %cst_5 : f32 to vector<8x128xf32>
    %7 = arith.mulf %6, %5 : vector<8x128xf32>
    %cst_6 = arith.constant 0.707106769 : f32
    %8 = vector.broadcast %cst_6 : f32 to vector<8x128xf32>
    %9 = arith.mulf %5, %8 : vector<8x128xf32>
    %10 = math.erf %9 : vector<8x128xf32>
    %cst_7 = arith.constant 1.000000e+00 : f32
    %11 = vector.broadcast %cst_7 : f32 to vector<8x128xf32>
    %12 = arith.addf %11, %10 : vector<8x128xf32>
    %13 = arith.mulf %7, %12 : vector<8x128xf32>
    %c0_8 = arith.constant 0 : index
    %c0_9 = arith.constant 0 : index
    %14 = vector.load %arg4[%c0_8, %c0_9] : memref<128x256xf32, #tpu.memory_space<vmem>>, vector<128x256xf32>
    %cst_10 = arith.constant dense<0.000000e+00> : vector<8x256xf32>
    %15 = tpu.matmul %13, %14, %cst_10 {dimension_numbers = #tpu.dot_dimension_numbers<[1], [0], [0], [1], [0, 0, 1, 1], [], []>} : vector<8x128xf32>, vector<128x256xf32>, vector<8x256xf32> -> vector<8x256xf32>
    %c0_11 = arith.constant 0 : index
    %c0_12 = arith.constant 0 : index
    %16 = vector.load %arg5[%c0_11, %c0_12] : memref<1x256xf32, #tpu.memory_space<vmem>>, vector<1x256xf32>
    %17 = vector.broadcast %16 : vector<1x256xf32> to vector<8x256xf32>
    %18 = arith.addf %15, %17 : vector<8x256xf32>
    %19 = vector.extract_strided_slice %18 {offsets = [0, 0], sizes = [8, 128], strides = [1, 1]} : vector<8x256xf32> to vector<8x128xf32>
    %c0_13 = arith.constant 0 : index
    %c0_14 = arith.constant 0 : index
    %20 = vector.load %arg6[%c0_13, %c0_14] : memref<8x128xf32, #tpu.memory_space<vmem>>, vector<8x128xf32>
    tpu.vector_store %arg6[%c0_13, %c0_14], %19 {strides = array<i32>} : memref<8x128xf32, #tpu.memory_space<vmem>>, vector<8x128xf32>,
    %21 = vector.extract_strided_slice %18 {offsets = [0, 128], sizes = [8, 128], strides = [1, 1]} : vector<8x256xf32> to vector<8x128xf32>
    %cst_15 = arith.constant 0.000000e+00 : f32
    %22 = vector.broadcast %cst_15 : f32 to vector<8x128xf32>
    %23 = arith.maximumf %21, %22 : vector<8x128xf32>
    %24 = math.absf %21 : vector<8x128xf32>
    %cst_16 = arith.constant 0.000000e+00 : f32
    %25 = vector.broadcast %cst_16 : f32 to vector<8x128xf32>
    %26 = arith.subf %25, %24 : vector<8x128xf32>
    %27 = math.exp %26 : vector<8x128xf32>
    %28 = math.log1p %27 : vector<8x128xf32>
    %29 = arith.addf %23, %28 : vector<8x128xf32>
    %cst_17 = arith.constant 9.99999997E-7 : f32
    %30 = vector.broadcast %cst_17 : f32 to vector<8x128xf32>
    %31 = arith.addf %29, %30 : vector<8x128xf32>
    %c0_18 = arith.constant 0 : index
    %c0_19 = arith.constant 0 : index
    %32 = vector.load %arg7[%c0_18, %c0_19] : memref<8x128xf32, #tpu.memory_space<vmem>>, vector<8x128xf32>
    tpu.vector_store %arg7[%c0_18, %c0_19], %31 {strides = array<i32>} : memref<8x128xf32, #tpu.memory_space<vmem>>, vector<8x128xf32>,
    return
  }
  func.func @transform_0(%arg0: i32) -> (i32, i32) {
    %c0_i32 = arith.constant 0 : i32
    %c0_i32_0 = arith.constant 0 : i32
    return %arg0, %c0_i32 : i32, i32
  }
  func.func @transform_1(%arg0: i32) -> (i32, i32) {
    %c0_i32 = arith.constant 0 : i32
    %c0_i32_0 = arith.constant 0 : i32
    %c0_i32_1 = arith.constant 0 : i32
    return %c0_i32, %c0_i32_0 : i32, i32
  }
  func.func @transform_2(%arg0: i32) -> (i32, i32) {
    %c0_i32 = arith.constant 0 : i32
    %c0_i32_0 = arith.constant 0 : i32
    %c0_i32_1 = arith.constant 0 : i32
    return %c0_i32, %c0_i32_0 : i32, i32
  }
  func.func @transform_3(%arg0: i32) -> (i32, i32) {
    %c0_i32 = arith.constant 0 : i32
    %c0_i32_0 = arith.constant 0 : i32
    %c0_i32_1 = arith.constant 0 : i32
    return %c0_i32, %c0_i32_0 : i32, i32
  }
  func.func @transform_4(%arg0: i32) -> (i32, i32) {
    %c0_i32 = arith.constant 0 : i32
    %c0_i32_0 = arith.constant 0 : i32
    %c0_i32_1 = arith.constant 0 : i32
    return %c0_i32, %c0_i32_0 : i32, i32
  }
  func.func @transform_5(%arg0: i32) -> (i32, i32) {
    %c0_i32 = arith.constant 0 : i32
    %c0_i32_0 = arith.constant 0 : i32
    return %arg0, %c0_i32 : i32, i32
  }
  func.func @transform_6(%arg0: i32) -> (i32, i32) {
    %c0_i32 = arith.constant 0 : i32
    %c0_i32_0 = arith.constant 0 : i32
    return %arg0, %c0_i32 : i32, i32
  }
}

module attributes {stable_mosaic.version = 11 : i64} {
  func.func @_fused_uncertainty_kernel(%arg0: i32, %arg1: memref<8x32xf32, #tpu.memory_space<vmem>>, %arg2: memref<32x128xf32, #tpu.memory_space<vmem>>, %arg3: memref<1x128xf32, #tpu.memory_space<vmem>>, %arg4: memref<128x256xf32, #tpu.memory_space<vmem>>, %arg5: memref<1x256xf32, #tpu.memory_space<vmem>>, %arg6: memref<8x128xf32, #tpu.memory_space<vmem>>, %arg7: memref<8x128xf32, #tpu.memory_space<vmem>>) attributes {dimension_semantics = [#tpu.dimension_semantics<parallel>], iteration_bounds = array<i64: 1>, scalar_prefetch = 0 : i64, scratch_operands = 0 : i64, tpu.core_type = #tpu.core_type<tc>, window_params = [{transform_indices = @transform_0, window_bounds = array<i64: 8, 32>}, {pipeline_mode = #tpu.pipeline_mode<synchronous>, transform_indices = @transform_1, window_bounds = array<i64: 32, 128>}, {pipeline_mode = #tpu.pipeline_mode<synchronous>, transform_indices = @transform_2, window_bounds = array<i64: 1, 128>}, {pipeline_mode = #tpu.pipeline_mode<synchronous>, transform_indices = @transform_3, window_bounds = array<i64: 128, 256>}, {pipeline_mode = #tpu.pipeline_mode<synchronous>, transform_indices = @transform_4, window_bounds = array<i64: 1, 256>}, {transform_indices = @transform_5, window_bounds = array<i64: 8, 128>}, {transform_indices = @transform_6, window_bounds = array<i64: 8, 128>}]} {
    %c0 = arith.constant 0 : index
    %c0_0 = arith.constant 0 : index
    %0 = vector.load %arg1[%c0, %c0_0] : memref<8x32xf32, #tpu.memory_space<vmem>>, vector<8x32xf32>
    %c0_1 = arith.constant 0 : index
    %c0_2 = arith.constant 0 : index
    %1 = vector.load %arg2[%c0_1, %c0_2] : memref<32x128xf32, #tpu.memory_space<vmem>>, vector<32x128xf32>
    %cst = arith.constant dense<0.000000e+00> : vector<8x128xf32>
    %2 = tpu.matmul %0, %1, %cst {dimension_numbers = #tpu.dot_dimension_numbers<[1], [0], [0], [1], [0, 0, 1, 1], [], []>} : vector<8x32xf32>, vector<32x128xf32>, vector<8x128xf32> -> vector<8x128xf32>
    %c0_3 = arith.constant 0 : index
    %c0_4 = arith.constant 0 : index
    %3 = vector.load %arg3[%c0_3, %c0_4] : memref<1x128xf32, #tpu.memory_space<vmem>>, vector<1x128xf32>
    %4 = vector.broadcast %3 : vector<1x128xf32> to vector<8x128xf32>
    %5 = arith.addf %2, %4 : vector<8x128xf32>
    %cst_5 = arith.constant 5.000000e-01 : f32
    %6 = vector.broadcast %cst_5 : f32 to vector<8x128xf32>
    %7 = arith.mulf %6, %5 : vector<8x128xf32>
    %cst_6 = arith.constant 0.707106769 : f32
    %8 = vector.broadcast %cst_6 : f32 to vector<8x128xf32>
    %9 = arith.mulf %5, %8 : vector<8x128xf32>
    %10 = math.erf %9 : vector<8x128xf32>
    %cst_7 = arith.constant 1.000000e+00 : f32
    %11 = vector.broadcast %cst_7 : f32 to vector<8x128xf32>
    %12 = arith.addf %11, %10 : vector<8x128xf32>
    %13 = arith.mulf %7, %12 : vector<8x128xf32>
    %c0_8 = arith.constant 0 : index
    %c0_9 = arith.constant 0 : index
    %14 = vector.load %arg4[%c0_8, %c0_9] : memref<128x256xf32, #tpu.memory_space<vmem>>, vector<128x256xf32>
    %cst_10 = arith.constant dense<0.000000e+00> : vector<8x256xf32>
    %15 = tpu.matmul %13, %14, %cst_10 {dimension_numbers = #tpu.dot_dimension_numbers<[1], [0], [0], [1], [0, 0, 1, 1], [], []>} : vector<8x128xf32>, vector<128x256xf32>, vector<8x256xf32> -> vector<8x256xf32>
    %c0_11 = arith.constant 0 : index
    %c0_12 = arith.constant 0 : index
    %16 = vector.load %arg5[%c0_11, %c0_12] : memref<1x256xf32, #tpu.memory_space<vmem>>, vector<1x256xf32>
    %17 = vector.broadcast %16 : vector<1x256xf32> to vector<8x256xf32>
    %18 = arith.addf %15, %17 : vector<8x256xf32>
    %19 = vector.extract_strided_slice %18 {offsets = [0, 0], sizes = [8, 128], strides = [1, 1]} : vector<8x256xf32> to vector<8x128xf32>
    %c0_13 = arith.constant 0 : index
    %c0_14 = arith.constant 0 : index
    %20 = vector.load %arg6[%c0_13, %c0_14] : memref<8x128xf32, #tpu.memory_space<vmem>>, vector<8x128xf32>
    tpu.vector_store %arg6[%c0_13, %c0_14], %19 {strides = array<i32>} : memref<8x128xf32, #tpu.memory_space<vmem>>, vector<8x128xf32>,
    %21 = vector.extract_strided_slice %18 {offsets = [0, 128], sizes = [8, 128], strides = [1, 1]} : vector<8x256xf32> to vector<8x128xf32>
    %cst_15 = arith.constant 0.000000e+00 : f32
    %22 = vector.broadcast %cst_15 : f32 to vector<8x128xf32>
    %23 = arith.maximumf %21, %22 : vector<8x128xf32>
    %24 = math.absf %21 : vector<8x128xf32>
    %cst_16 = arith.constant 0.000000e+00 : f32
    %25 = vector.broadcast %cst_16 : f32 to vector<8x128xf32>
    %26 = arith.subf %25, %24 : vector<8x128xf32>
    %27 = math.exp %26 : vector<8x128xf32>
    %28 = math.log1p %27 : vector<8x128xf32>
    %29 = arith.addf %23, %28 : vector<8x128xf32>
    %cst_17 = arith.constant 9.99999997E-7 : f32
    %30 = vector.broadcast %cst_17 : f32 to vector<8x128xf32>
    %31 = arith.addf %29, %30 : vector<8x128xf32>
    %c0_18 = arith.constant 0 : index
    %c0_19 = arith.constant 0 : index
    %32 = vector.load %arg7[%c0_18, %c0_19] : memref<8x128xf32, #tpu.memory_space<vmem>>, vector<8x128xf32>
    tpu.vector_store %arg7[%c0_18, %c0_19], %31 {strides = array<i32>} : memref<8x128xf32, #tpu.memory_space<vmem>>, vector<8x128xf32>,
    return
  }
  func.func @transform_0(%arg0: i32) -> (i32, i32) {
    %c0_i32 = arith.constant 0 : i32
    %c0_i32_0 = arith.constant 0 : i32
    return %arg0, %c0_i32 : i32, i32
  }
  func.func @transform_1(%arg0: i32) -> (i32, i32) {
    %c0_i32 = arith.constant 0 : i32
    %c0_i32_0 = arith.constant 0 : i32
    %c0_i32_1 = arith.constant 0 : i32
    return %c0_i32, %c0_i32_0 : i32, i32
  }
  func.func @transform_2(%arg0: i32) -> (i32, i32) {
    %c0_i32 = arith.constant 0 : i32
    %c0_i32_0 = arith.constant 0 : i32
    %c0_i32_1 = arith.constant 0 : i32
    return %c0_i32, %c0_i32_0 : i32, i32
  }
  func.func @transform_3(%arg0: i32) -> (i32, i32) {
    %c0_i32 = arith.constant 0 : i32
    %c0_i32_0 = arith.constant 0 : i32
    %c0_i32_1 = arith.constant 0 : i32
    return %c0_i32, %c0_i32_0 : i32, i32
  }
  func.func @transform_4(%arg0: i32) -> (i32, i32) {
    %c0_i32 = arith.constant 0 : i32
    %c0_i32_0 = arith.constant 0 : i32
    %c0_i32_1 = arith.constant 0 : i32
    return %c0_i32, %c0_i32_0 : i32, i32
  }
  func.func @transform_5(%arg0: i32) -> (i32, i32) {
    %c0_i32 = arith.constant 0 : i32
    %c0_i32_0 = arith.constant 0 : i32
    return %arg0, %c0_i32 : i32, i32
  }
  func.func @transform_6(%arg0: i32) -> (i32, i32) {
    %c0_i32 = arith.constant 0 : i32
    %c0_i32_0 = arith.constant 0 : i32
    return %arg0, %c0_i32 : i32, i32
  }
}

</mosaic_0001>

<llo_original>
// kernel: tpu_custom_call.1
$region0: #{tpu_custom_call.1}
  #allocation0 [shape = 'u32[]', space=smem, size = 0x4, offset = 0x4, fixed_abs, tag = 'smem constant byte address 0x4 - core index']
  #allocation1 [shape = 'u32[144,128]{1,0:T(1,128)}', space=vmem, size = 0x12000, scoped, tag = 'internal scratch']
  %s0 = inlined_call_operand.hbm [shape: f32[8,32], index: 0, kind: input, shape index: {}]
  %s1 = inlined_call_operand.hbm [shape: f32[32,128], index: 1, kind: input, shape index: {}]
  %s2 = inlined_call_operand.vmem [shape: f32[1,128], index: 2, kind: input, shape index: {}]
  %s3 = inlined_call_operand.hbm [shape: f32[128,256], index: 3, kind: input, shape index: {}]
  %s4 = inlined_call_operand.vmem [shape: f32[1,256], index: 4, kind: input, shape index: {}]
  %s5 = inlined_call_operand.hbm [shape: f32[8,128], index: 5, kind: output, shape index: {0}]
  %s6 = inlined_call_operand.hbm [shape: f32[8,128], index: 6, kind: output, shape index: {1}]
  %7 = xla_tuple %s5, %s6
  %s8 = sld [smem:[#allocation0]]
  $region50: #{tpu_custom_call.1} parent=0
    _
  %s10 = ssub.s32 1, %s8
  %s11 = scalar_select 0, %s10, %s8
  $region1: #{tpu_custom_call.1} parent=0
    #allocation2 [shape = 'u8[4096]{0}', space=vmem, size = 0x1000, scoped, tag = 'input window, operand 0, single buffered']
    #allocation3 [shape = 's32[1]{0}', space=sflag, size = 0x4, scoped, tag = 'scoped memory for tpu_custom_call.1']
    #allocation4 [shape = 's32[1]{0}', space=sflag, size = 0x4, scoped, tag = 'scoped memory for tpu_custom_call.1']
    #allocation5 [shape = 'u8[16384]{0}', space=vmem, size = 0x4000, scoped, tag = 'input window, operand 1, single buffered']
    #allocation6 [shape = 's32[1]{0}', space=sflag, size = 0x4, scoped, tag = 'scoped memory for tpu_custom_call.1']
    #allocation7 [shape = 'u8[131072]{0}', space=vmem, size = 0x20000, scoped, tag = 'input window, operand 3, single buffered']
    #allocation8 [shape = 'u8[4096]{0}', space=vmem, size = 0x1000, scoped, tag = 'output window, operand 0, single buffered']
    #allocation9 [shape = 'u8[4096]{0}', space=vmem, size = 0x1000, scoped, tag = 'output window, operand 1, single buffered']
    #allocation10 [shape = 's32[1]{0}', space=sflag, size = 0x4, scoped, tag = 'scoped memory for tpu_custom_call.1']
    %12 = vsyncpa [#allocation3], 0
    %13 = vsyncpa [#allocation6], 0
    %14 = vsyncpa [#allocation4], 0
    %15 = vsyncpa [#allocation10], 0
    // Predicated region
    $region2: #{tpu_custom_call.1} parent=1 // pred_check
      _
    $region3: #{tpu_custom_call.1} parent=1 // pred_check_branch
      %17 = sbr.rel (0) target = $region5
    $region4: #{tpu_custom_call.1} parent=1 // pred_region
      %s19 = ssub.s32 128, 128
      %20 = vsyncadd [#allocation3], %s19
      %s22 = sshll.u32 [#allocation2], 4
      %s23 = int_to_ptr.vmem [resolvable:$true] %s22
      %25 = dma.hbm_to_vmem [thread:$0]  %s0, 128, %s23, [#allocation3]
    $region5: #{tpu_custom_call.1} parent=1 // pred_fallthru
      _
    // Predicated region
    $region6: #{tpu_custom_call.1} parent=1 // pred_check
      _
    $region7: #{tpu_custom_call.1} parent=1 // pred_check_branch
      %27 = sbr.rel (0) target = $region9
    $region8: #{tpu_custom_call.1} parent=1 // pred_region
      %s29 = ssub.s32 512, 512
      %30 = vsyncadd [#allocation6], %s29
      %s31 = sshll.u32 [#allocation5], 4
      %s32 = int_to_ptr.vmem [resolvable:$true] %s31
      %37 = dma.hbm_to_vmem [thread:$0]  %s1, 512, %s32, [#allocation6], 128, 128, 8
    $region9: #{tpu_custom_call.1} parent=1 // pred_fallthru
      _
    // Predicated region
    $region10: #{tpu_custom_call.1} parent=1 // pred_check
      _
    $region11: #{tpu_custom_call.1} parent=1 // pred_check_branch
      %39 = sbr.rel (0) target = $region13
    $region12: #{tpu_custom_call.1} parent=1 // pred_region
      _
    $region13: #{tpu_custom_call.1} parent=1 // pred_fallthru
      _
    // Predicated region
    $region14: #{tpu_custom_call.1} parent=1 // pred_check
      _
    $region15: #{tpu_custom_call.1} parent=1 // pred_check_branch
      %41 = sbr.rel (0) target = $region17
    $region16: #{tpu_custom_call.1} parent=1 // pred_region
      %s43 = ssub.s32 4096, 4096
      %44 = vsyncadd [#allocation6], %s43
      %s45 = sshll.u32 [#allocation7], 4
      %s46 = int_to_ptr.vmem [resolvable:$true] %s45
      %51 = dma.hbm_to_vmem [thread:$0]  %s3, 4096, %s46, [#allocation6], 256, 256, 16
    $region17: #{tpu_custom_call.1} parent=1 // pred_fallthru
      _
    // Predicated region
    $region18: #{tpu_custom_call.1} parent=1 // pred_check
      _
    $region19: #{tpu_custom_call.1} parent=1 // pred_check_branch
      %53 = sbr.rel (0) target = $region21
    $region20: #{tpu_custom_call.1} parent=1 // pred_region
      _
    $region21: #{tpu_custom_call.1} parent=1 // pred_fallthru
      _
    // Predicated region
    $region22: #{tpu_custom_call.1} parent=1 // pred_check
      _
    $region23: #{tpu_custom_call.1} parent=1 // pred_check_branch
      %55 = sbr.rel (0) target = $region25
    $region24: #{tpu_custom_call.1} parent=1 // pred_region
      %56 = dma.done [#allocation3], 128
    $region25: #{tpu_custom_call.1} parent=1 // pred_fallthru
      _
    // Predicated region
    $region26: #{tpu_custom_call.1} parent=1 // pred_check
      _
    $region27: #{tpu_custom_call.1} parent=1 // pred_check_branch
      %58 = sbr.rel (0) target = $region29
    $region28: #{tpu_custom_call.1} parent=1 // pred_region
      %59 = dma.done [#allocation6], 512
    $region29: #{tpu_custom_call.1} parent=1 // pred_fallthru
      _
    // Predicated region
    $region30: #{tpu_custom_call.1} parent=1 // pred_check
      _
    $region31: #{tpu_custom_call.1} parent=1 // pred_check_branch
      %61 = sbr.rel (0) target = $region33
    $region32: #{tpu_custom_call.1} parent=1 // pred_region
      %62 = dma.done [#allocation6], 4096
    $region33: #{tpu_custom_call.1} parent=1 // pred_fallthru
      _
    %v63 = vld [vmem:[#allocation2] sm:$0xff]
    %v64 = vld [vmem:[#allocation5] sm:$0xff]
    %v65 = vld [vmem:[#allocation5 + $0x8] sm:$0xff]
    %v66 = vld [vmem:[#allocation5 + $0x10] sm:$0xff]
    %v67 = vld [vmem:[#allocation5 + $0x18] sm:$0xff]
    %v68 = vld [vmem:[%s2] sm:$0x1]
    %v70 = vlaneseq
    %v71 = vshrl.u32 %v70, 7
    %v72 = vsub.s32 0, %v71
    %v73 = vrot.slane %v68, %v72
    %vm75 = vcmask 261120
    %v77 = vsel %vm75, %v63, 0
    %79 = vmatprep.subr.mxu0 0.0
    %80 = vmatpush1.msra.mxu0 0.0
    %81 = vmatprep.subr.mxu0 0.0
    %82 = vmatpush1.msra.mxu0 0.0
    %83 = vmatprep.subr.mxu0 0.0
    %84 = vmatpush1.msra.mxu0 0.0
    %85 = vmatprep.subr.mxu0 0.0
    %86 = vmatpush1.msra.mxu0 0.0
    %87 = vmatprep.subr.mxu0 0.0
    %88 = vmatpush1.msra.mxu0 0.0
    %89 = vmatprep.subr.mxu0 0.0
    %90 = vmatpush1.msra.mxu0 0.0
    %91 = vmatprep.subr.mxu0 0.0
    %92 = vmatpush1.msra.mxu0 0.0
    %93 = vmatprep.subr.mxu0 0.0
    %94 = vmatpush1.msra.mxu0 0.0
    %95 = vmatprep.subr.mxu0 0.0
    %96 = vmatpush1.msra.mxu0 0.0
    %97 = vmatprep.subr.mxu0 0.0
    %98 = vmatpush1.msra.mxu0 0.0
    %99 = vmatprep.subr.mxu0 0.0
    %100 = vmatpush1.msra.mxu0 0.0
    %101 = vmatprep.subr.mxu0 0.0
    %102 = vmatpush1.msra.mxu0 0.0
    %103 = vmatprep.subr.mxu0 0.0
    %104 = vmatpush1.msra.mxu0 %v67
    %105 = vmatprep.subr.mxu0 0.0
    %106 = vmatpush1.msra.mxu0 %v66
    %107 = vmatprep.subr.mxu0 0.0
    %108 = vmatpush1.msra.mxu0 %v65
    %109 = vmatprep.subr.mxu0 0.0
    %110 = vmatpush1.msra.mxu0 %v64
    %111 = vmatprep.subr.mxu0 0.0
    %112 = vmatpush2.msra.mxu0 0.0
    %113 = vmatprep.subr.mxu0 0.0
    %114 = vmatpush2.msra.mxu0 0.0
    %115 = vmatprep.subr.mxu0 0.0
    %116 = vmatpush2.msra.mxu0 0.0
    %117 = vmatprep.subr.mxu0 0.0
    %118 = vmatpush2.msra.mxu0 0.0
    %119 = vmatprep.subr.mxu0 0.0
    %120 = vmatpush2.msra.mxu0 0.0
    %121 = vmatprep.subr.mxu0 0.0
    %122 = vmatpush2.msra.mxu0 0.0
    %123 = vmatprep.subr.mxu0 0.0
    %124 = vmatpush2.msra.mxu0 0.0
    %125 = vmatprep.subr.mxu0 0.0
    %126 = vmatpush2.msra.mxu0 0.0
    %127 = vmatprep.subr.mxu0 0.0
    %128 = vmatpush2.msra.mxu0 0.0
    %129 = vmatprep.subr.mxu0 0.0
    %130 = vmatpush2.msra.mxu0 0.0
    %131 = vmatprep.subr.mxu0 0.0
    %132 = vmatpush2.msra.mxu0 0.0
    %133 = vmatprep.subr.mxu0 0.0
    %134 = vmatpush2.msra.mxu0 0.0
    %135 = vmatprep.subr.mxu0 0.0
    %136 = vmatpush2.msra.mxu0 0.0
    %137 = vmatprep.subr.mxu0 0.0
    %138 = vmatpush2.msra.mxu0 0.0
    %139 = vmatprep.subr.mxu0 0.0
    %140 = vmatpush2.msra.mxu0 0.0
    %141 = vmatprep.subr.mxu0 0.0
    %142 = vmatpush2.msra.mxu0 0.0
    %143 = vmatprep.mubr.f32.mxu0 0.0
    %144 = vmatmul.mubr.f32.gmra.mxu0 %v77
    %v145 = vpop.f32.mrf.mxu0
    %v146 = vadd.f32 %v73, %v145
    %v147 = vpop.f32.mrf.mxu0
    %148 = vdwg.mxu0
    %v149 = vmul.f32 %v146, 0.5
    %v150 = vmul.f32 %v146, 0.70710677
    %v151 = verf.f32.pop %v150
    %v152 = vadd.f32 %v151, 1.0
    %v153 = vmul.f32 %v149, %v152
    %v154 = vld [vmem:[#allocation7] sm:$0xff]
    %v155 = vld [vmem:[#allocation7 + $0x8] sm:$0xff]
    %v156 = vld [vmem:[#allocation7 + $0x10] sm:$0xff]
    %v157 = vld [vmem:[#allocation7 + $0x18] sm:$0xff]
    %v158 = vld [vmem:[#allocation7 + $0x20] sm:$0xff]
    %v159 = vld [vmem:[#allocation7 + $0x28] sm:$0xff]
    %v160 = vld [vmem:[#allocation7 + $0x30] sm:$0xff]
    %v161 = vld [vmem:[#allocation7 + $0x38] sm:$0xff]
    %v162 = vld [vmem:[#allocation7 + $0x40] sm:$0xff]
    %v163 = vld [vmem:[#allocation7 + $0x48] sm:$0xff]
    %v164 = vld [vmem:[#allocation7 + $0x50] sm:$0xff]
    %v165 = vld [vmem:[#allocation7 + $0x58] sm:$0xff]
    %v166 = vld [vmem:[#allocation7 + $0x60] sm:$0xff]
    %v167 = vld [vmem:[#allocation7 + $0x68] sm:$0xff]
    %v168 = vld [vmem:[#allocation7 + $0x70] sm:$0xff]
    %v169 = vld [vmem:[#allocation7 + $0x78] sm:$0xff]
    %v170 = vld [vmem:[#allocation7 + $0x80] sm:$0xff]
    %v171 = vld [vmem:[#allocation7 + $0x88] sm:$0xff]
    %v172 = vld [vmem:[#allocation7 + $0x90] sm:$0xff]
    %v173 = vld [vmem:[#allocation7 + $0x98] sm:$0xff]
    %v174 = vld [vmem:[#allocation7 + $0xa0] sm:$0xff]
    %v175 = vld [vmem:[#allocation7 + $0xa8] sm:$0xff]
    %v176 = vld [vmem:[#allocation7 + $0xb0] sm:$0xff]
    %v177 = vld [vmem:[#allocation7 + $0xb8] sm:$0xff]
    %v178 = vld [vmem:[#allocation7 + $0xc0] sm:$0xff]
    %v179 = vld [vmem:[#allocation7 + $0xc8] sm:$0xff]
    %v180 = vld [vmem:[#allocation7 + $0xd0] sm:$0xff]
    %v181 = vld [vmem:[#allocation7 + $0xd8] sm:$0xff]
    %v182 = vld [vmem:[#allocation7 + $0xe0] sm:$0xff]
    %v183 = vld [vmem:[#allocation7 + $0xe8] sm:$0xff]
    %v184 = vld [vmem:[#allocation7 + $0xf0] sm:$0xff]
    %v185 = vld [vmem:[#allocation7 + $0xf8] sm:$0xff]
    %v186 = vld [vmem:[%s4] sm:$0x3]
    %v188 = vlaneseq
    %v189 = vshrl.u32 %v188, 7
    %v190 = vsub.s32 0, %v189
    %v191 = vrot.slane %v186, %v190
    %v192 = vlaneseq
    %v193 = vshrl.u32 %v192, 7
    %v194 = vsub.s32 1, %v193
    %v195 = vrot.slane %v186, %v194
    %198 = vmatprep.subr.mxu0 %v185
    %199 = vmatpush1.msra.mxu0 %v184
    %200 = vmatprep.subr.mxu0 %v183
    %201 = vmatpush1.msra.mxu0 %v182
    %202 = vmatprep.subr.mxu0 %v181
    %203 = vmatpush1.msra.mxu0 %v180
    %204 = vmatprep.subr.mxu0 %v179
    %205 = vmatpush1.msra.mxu0 %v178
    %206 = vmatprep.subr.mxu0 %v177
    %207 = vmatpush1.msra.mxu0 %v176
    %208 = vmatprep.subr.mxu0 %v175
    %209 = vmatpush1.msra.mxu0 %v174
    %210 = vmatprep.subr.mxu0 %v173
    %211 = vmatpush1.msra.mxu0 %v172
    %212 = vmatprep.subr.mxu0 %v171
    %213 = vmatpush1.msra.mxu0 %v170
    %214 = vmatprep.subr.mxu0 %v169
    %215 = vmatpush1.msra.mxu0 %v168
    %216 = vmatprep.subr.mxu0 %v167
    %217 = vmatpush1.msra.mxu0 %v166
    %218 = vmatprep.subr.mxu0 %v165
    %219 = vmatpush1.msra.mxu0 %v164
    %220 = vmatprep.subr.mxu0 %v163
    %221 = vmatpush1.msra.mxu0 %v162
    %222 = vmatprep.subr.mxu0 %v161
    %223 = vmatpush1.msra.mxu0 %v160
    %224 = vmatprep.subr.mxu0 %v159
    %225 = vmatpush1.msra.mxu0 %v158
    %226 = vmatprep.subr.mxu0 %v157
    %227 = vmatpush1.msra.mxu0 %v156
    %228 = vmatprep.subr.mxu0 %v155
    %229 = vmatpush1.msra.mxu0 %v154
    %230 = vmatprep.subr.mxu0 0.0
    %231 = vmatpush2.msra.mxu0 0.0
    %232 = vmatprep.subr.mxu0 0.0
    %233 = vmatpush2.msra.mxu0 0.0
    %234 = vmatprep.subr.mxu0 0.0
    %235 = vmatpush2.msra.mxu0 0.0
    %236 = vmatprep.subr.mxu0 0.0
    %237 = vmatpush2.msra.mxu0 0.0
    %238 = vmatprep.subr.mxu0 0.0
    %239 = vmatpush2.msra.mxu0 0.0
    %240 = vmatprep.subr.mxu0 0.0
    %241 = vmatpush2.msra.mxu0 0.0
    %242 = vmatprep.subr.mxu0 0.0
    %243 = vmatpush2.msra.mxu0 0.0
    %244 = vmatprep.subr.mxu0 0.0
    %245 = vmatpush2.msra.mxu0 0.0
    %246 = vmatprep.subr.mxu0 0.0
    %247 = vmatpush2.msra.mxu0 0.0
    %248 = vmatprep.subr.mxu0 0.0
    %249 = vmatpush2.msra.mxu0 0.0
    %250 = vmatprep.subr.mxu0 0.0
    %251 = vmatpush2.msra.mxu0 0.0
    %252 = vmatprep.subr.mxu0 0.0
    %253 = vmatpush2.msra.mxu0 0.0
    %254 = vmatprep.subr.mxu0 0.0
    %255 = vmatpush2.msra.mxu0 0.0
    %256 = vmatprep.subr.mxu0 0.0
    %257 = vmatpush2.msra.mxu0 0.0
    %258 = vmatprep.subr.mxu0 0.0
    %259 = vmatpush2.msra.mxu0 0.0
    %260 = vmatprep.subr.mxu0 0.0
    %261 = vmatpush2.msra.mxu0 0.0
    %262 = vmatprep.mubr.f32.mxu0 0.0
    %263 = vmatmul.mubr.f32.gmra.mxu0 %v153
    %v264 = vpop.f32.mrf.mxu0
    %v265 = vadd.f32 %v191, %v264
    %v266 = vpop.f32.mrf.mxu0
    %v267 = vadd.f32 %v195, %v266
    %268 = vdwg.mxu0
    %269 = vst [vmem:[#allocation8] sm:$0xff] %v265
    %v270 = vmax.f32 %v267, 0.0
    %v271 = vand.u32 2147483647, %v267
    %v272 = vsub.f32 0.0, %v271
    %v273 = vmul.f32 %v272, 1.442695
    %v274 = vpow.pop %v273
    %v275 = vadd.f32 %v274, 1.0
    %v276 = vlog2.pop %v275
    %v277 = vmul.f32 %v276, 0.6931472
    %v278 = vmul.f32 -0.5, %v274
    %v279 = vadd.f32 %v278, 1.0
    %v280 = vmul.f32 %v279, %v274
    %v281 = vand.u32 2147483647, %v274
    %vm282 = vcmp.lt.f32.partialorder %v281, 0.0004427343
    %v283 = vsel %vm282, %v280, %v277
    %v284 = vadd.f32 %v270, %v283
    %v285 = vadd.f32 %v284, 1e-06
    %286 = vst [vmem:[#allocation9] sm:$0xff] %v285
    // Predicated region
    $region34: #{tpu_custom_call.1} parent=1 // pred_check
      _
    $region35: #{tpu_custom_call.1} parent=1 // pred_check_branch
      %288 = sbr.rel (0) target = $region37
    $region36: #{tpu_custom_call.1} parent=1 // pred_region
      %s290 = ssub.s32 128, 128
      %291 = vsyncadd [#allocation4], %s290
      %s293 = sshll.u32 [#allocation8], 4
      %s294 = int_to_ptr.vmem [resolvable:$true] %s293
      %296 = dma.vmem_to_hbm [thread:$0]  %s294, 128, %s5, [#allocation4]
    $region37: #{tpu_custom_call.1} parent=1 // pred_fallthru
      _
    // Predicated region
    $region38: #{tpu_custom_call.1} parent=1 // pred_check
      _
    $region39: #{tpu_custom_call.1} parent=1 // pred_check_branch
      %298 = sbr.rel (0) target = $region41
    $region40: #{tpu_custom_call.1} parent=1 // pred_region
      %s300 = ssub.s32 128, 128
      %301 = vsyncadd [#allocation10], %s300
      %s303 = sshll.u32 [#allocation9], 4
      %s304 = int_to_ptr.vmem [resolvable:$true] %s303
      %306 = dma.vmem_to_hbm [thread:$0]  %s304, 128, %s6, [#allocation10]
    $region41: #{tpu_custom_call.1} parent=1 // pred_fallthru
      _
    // Predicated region
    $region42: #{tpu_custom_call.1} parent=1 // pred_check
      _
    $region43: #{tpu_custom_call.1} parent=1 // pred_check_branch
      %308 = sbr.rel (0) target = $region45
    $region44: #{tpu_custom_call.1} parent=1 // pred_region
      %309 = dma.done [#allocation4], 128
    $region45: #{tpu_custom_call.1} parent=1 // pred_fallthru
      _
    // Predicated region
    $region46: #{tpu_custom_call.1} parent=1 // pred_check
      _
    $region47: #{tpu_custom_call.1} parent=1 // pred_check_branch
      %311 = sbr.rel (0) target = $region49
    $region48: #{tpu_custom_call.1} parent=1 // pred_region
      %312 = dma.done [#allocation10], 128
    $region49: #{tpu_custom_call.1} parent=1 // pred_fallthru
      _
    %313 = vsyncpa [#allocation3], 1
    %314 = vsyncpa [#allocation6], 1
    %315 = vsyncpa [#allocation4], 1
    %316 = vsyncpa [#allocation10], 1

// kernel: tpu_custom_call.1
$region0: #{tpu_custom_call.1}
  #allocation0 [shape = 'u32[]', space=smem, size = 0x4, offset = 0x4, fixed_abs, tag = 'smem constant byte address 0x4 - core index']
  #allocation1 [shape = 'u32[144,128]{1,0:T(1,128)}', space=vmem, size = 0x12000, scoped, tag = 'internal scratch']
  %s0 = inlined_call_operand.hbm [shape: f32[8,32], index: 0, kind: input, shape index: {}]
  %s1 = inlined_call_operand.hbm [shape: f32[32,128], index: 1, kind: input, shape index: {}]
  %s2 = inlined_call_operand.vmem [shape: f32[1,128], index: 2, kind: input, shape index: {}]
  %s3 = inlined_call_operand.hbm [shape: f32[128,256], index: 3, kind: input, shape index: {}]
  %s4 = inlined_call_operand.vmem [shape: f32[1,256], index: 4, kind: input, shape index: {}]
  %s5 = inlined_call_operand.hbm [shape: f32[8,128], index: 5, kind: output, shape index: {0}]
  %s6 = inlined_call_operand.hbm [shape: f32[8,128], index: 6, kind: output, shape index: {1}]
  %7 = xla_tuple %s5, %s6
  %s8 = sld [smem:[#allocation0]]
  $region50: #{tpu_custom_call.1} parent=0
    _
  %s10 = ssub.s32 1, %s8
  %s11 = scalar_select 0, %s10, %s8
  $region1: #{tpu_custom_call.1} parent=0
    #allocation2 [shape = 'u8[4096]{0}', space=vmem, size = 0x1000, scoped, tag = 'input window, operand 0, single buffered']
    #allocation3 [shape = 's32[1]{0}', space=sflag, size = 0x4, scoped, tag = 'scoped memory for tpu_custom_call.1']
    #allocation4 [shape = 's32[1]{0}', space=sflag, size = 0x4, scoped, tag = 'scoped memory for tpu_custom_call.1']
    #allocation5 [shape = 'u8[16384]{0}', space=vmem, size = 0x4000, scoped, tag = 'input window, operand 1, single buffered']
    #allocation6 [shape = 's32[1]{0}', space=sflag, size = 0x4, scoped, tag = 'scoped memory for tpu_custom_call.1']
    #allocation7 [shape = 'u8[131072]{0}', space=vmem, size = 0x20000, scoped, tag = 'input window, operand 3, single buffered']
    #allocation8 [shape = 'u8[4096]{0}', space=vmem, size = 0x1000, scoped, tag = 'output window, operand 0, single buffered']
    #allocation9 [shape = 'u8[4096]{0}', space=vmem, size = 0x1000, scoped, tag = 'output window, operand 1, single buffered']
    #allocation10 [shape = 's32[1]{0}', space=sflag, size = 0x4, scoped, tag = 'scoped memory for tpu_custom_call.1']
    %12 = vsyncpa [#allocation3], 0
    %13 = vsyncpa [#allocation6], 0
    %14 = vsyncpa [#allocation4], 0
    %15 = vsyncpa [#allocation10], 0
    // Predicated region
    $region2: #{tpu_custom_call.1} parent=1 // pred_check
      _
    $region3: #{tpu_custom_call.1} parent=1 // pred_check_branch
      %17 = sbr.rel (0) target = $region5
    $region4: #{tpu_custom_call.1} parent=1 // pred_region
      %s19 = ssub.s32 128, 128
      %20 = vsyncadd [#allocation3], %s19
      %s22 = sshll.u32 [#allocation2], 4
      %s23 = int_to_ptr.vmem [resolvable:$true] %s22
      %25 = dma.hbm_to_vmem [thread:$0]  %s0, 128, %s23, [#allocation3]
    $region5: #{tpu_custom_call.1} parent=1 // pred_fallthru
      _
    // Predicated region
    $region6: #{tpu_custom_call.1} parent=1 // pred_check
      _
    $region7: #{tpu_custom_call.1} parent=1 // pred_check_branch
      %27 = sbr.rel (0) target = $region9
    $region8: #{tpu_custom_call.1} parent=1 // pred_region
      %s29 = ssub.s32 512, 512
      %30 = vsyncadd [#allocation6], %s29
      %s31 = sshll.u32 [#allocation5], 4
      %s32 = int_to_ptr.vmem [resolvable:$true] %s31
      %37 = dma.hbm_to_vmem [thread:$0]  %s1, 512, %s32, [#allocation6], 128, 128, 8
    $region9: #{tpu_custom_call.1} parent=1 // pred_fallthru
      _
    // Predicated region
    $region10: #{tpu_custom_call.1} parent=1 // pred_check
      _
    $region11: #{tpu_custom_call.1} parent=1 // pred_check_branch
      %39 = sbr.rel (0) target = $region13
    $region12: #{tpu_custom_call.1} parent=1 // pred_region
      _
    $region13: #{tpu_custom_call.1} parent=1 // pred_fallthru
      _
    // Predicated region
    $region14: #{tpu_custom_call.1} parent=1 // pred_check
      _
    $region15: #{tpu_custom_call.1} parent=1 // pred_check_branch
      %41 = sbr.rel (0) target = $region17
    $region16: #{tpu_custom_call.1} parent=1 // pred_region
      %s43 = ssub.s32 4096, 4096
      %44 = vsyncadd [#allocation6], %s43
      %s45 = sshll.u32 [#allocation7], 4
      %s46 = int_to_ptr.vmem [resolvable:$true] %s45
      %51 = dma.hbm_to_vmem [thread:$0]  %s3, 4096, %s46, [#allocation6], 256, 256, 16
    $region17: #{tpu_custom_call.1} parent=1 // pred_fallthru
      _
    // Predicated region
    $region18: #{tpu_custom_call.1} parent=1 // pred_check
      _
    $region19: #{tpu_custom_call.1} parent=1 // pred_check_branch
      %53 = sbr.rel (0) target = $region21
    $region20: #{tpu_custom_call.1} parent=1 // pred_region
      _
    $region21: #{tpu_custom_call.1} parent=1 // pred_fallthru
      _
    // Predicated region
    $region22: #{tpu_custom_call.1} parent=1 // pred_check
      _
    $region23: #{tpu_custom_call.1} parent=1 // pred_check_branch
      %55 = sbr.rel (0) target = $region25
    $region24: #{tpu_custom_call.1} parent=1 // pred_region
      %56 = dma.done [#allocation3], 128
    $region25: #{tpu_custom_call.1} parent=1 // pred_fallthru
      _
    // Predicated region
    $region26: #{tpu_custom_call.1} parent=1 // pred_check
      _
    $region27: #{tpu_custom_call.1} parent=1 // pred_check_branch
      %58 = sbr.rel (0) target = $region29
    $region28: #{tpu_custom_call.1} parent=1 // pred_region
      %59 = dma.done [#allocation6], 512
    $region29: #{tpu_custom_call.1} parent=1 // pred_fallthru
      _
    // Predicated region
    $region30: #{tpu_custom_call.1} parent=1 // pred_check
      _
    $region31: #{tpu_custom_call.1} parent=1 // pred_check_branch
      %61 = sbr.rel (0) target = $region33
    $region32: #{tpu_custom_call.1} parent=1 // pred_region
      %62 = dma.done [#allocation6], 4096
    $region33: #{tpu_custom_call.1} parent=1 // pred_fallthru
      _
    %v63 = vld [vmem:[#allocation2] sm:$0xff]
    %v64 = vld [vmem:[#allocation5] sm:$0xff]
    %v65 = vld [vmem:[#allocation5 + $0x8] sm:$0xff]
    %v66 = vld [vmem:[#allocation5 + $0x10] sm:$0xff]
    %v67 = vld [vmem:[#allocation5 + $0x18] sm:$0xff]
    %v68 = vld [vmem:[%s2] sm:$0x1]
    %v70 = vlaneseq
    %v71 = vshrl.u32 %v70, 7
    %v72 = vsub.s32 0, %v71
    %v73 = vrot.slane %v68, %v72
    %vm75 = vcmask 261120
    %v77 = vsel %vm75, %v63, 0
    %79 = vmatprep.subr.mxu0 0.0
    %80 = vmatpush1.msra.mxu0 0.0
    %81 = vmatprep.subr.mxu0 0.0
    %82 = vmatpush1.msra.mxu0 0.0
    %83 = vmatprep.subr.mxu0 0.0
    %84 = vmatpush1.msra.mxu0 0.0
    %85 = vmatprep.subr.mxu0 0.0
    %86 = vmatpush1.msra.mxu0 0.0
    %87 = vmatprep.subr.mxu0 0.0
    %88 = vmatpush1.msra.mxu0 0.0
    %89 = vmatprep.subr.mxu0 0.0
    %90 = vmatpush1.msra.mxu0 0.0
    %91 = vmatprep.subr.mxu0 0.0
    %92 = vmatpush1.msra.mxu0 0.0
    %93 = vmatprep.subr.mxu0 0.0
    %94 = vmatpush1.msra.mxu0 0.0
    %95 = vmatprep.subr.mxu0 0.0
    %96 = vmatpush1.msra.mxu0 0.0
    %97 = vmatprep.subr.mxu0 0.0
    %98 = vmatpush1.msra.mxu0 0.0
    %99 = vmatprep.subr.mxu0 0.0
    %100 = vmatpush1.msra.mxu0 0.0
    %101 = vmatprep.subr.mxu0 0.0
    %102 = vmatpush1.msra.mxu0 0.0
    %103 = vmatprep.subr.mxu0 0.0
    %104 = vmatpush1.msra.mxu0 %v67
    %105 = vmatprep.subr.mxu0 0.0
    %106 = vmatpush1.msra.mxu0 %v66
    %107 = vmatprep.subr.mxu0 0.0
    %108 = vmatpush1.msra.mxu0 %v65
    %109 = vmatprep.subr.mxu0 0.0
    %110 = vmatpush1.msra.mxu0 %v64
    %111 = vmatprep.subr.mxu0 0.0
    %112 = vmatpush2.msra.mxu0 0.0
    %113 = vmatprep.subr.mxu0 0.0
    %114 = vmatpush2.msra.mxu0 0.0
    %115 = vmatprep.subr.mxu0 0.0
    %116 = vmatpush2.msra.mxu0 0.0
    %117 = vmatprep.subr.mxu0 0.0
    %118 = vmatpush2.msra.mxu0 0.0
    %119 = vmatprep.subr.mxu0 0.0
    %120 = vmatpush2.msra.mxu0 0.0
    %121 = vmatprep.subr.mxu0 0.0
    %122 = vmatpush2.msra.mxu0 0.0
    %123 = vmatprep.subr.mxu0 0.0
    %124 = vmatpush2.msra.mxu0 0.0
    %125 = vmatprep.subr.mxu0 0.0
    %126 = vmatpush2.msra.mxu0 0.0
    %127 = vmatprep.subr.mxu0 0.0
    %128 = vmatpush2.msra.mxu0 0.0
    %129 = vmatprep.subr.mxu0 0.0
    %130 = vmatpush2.msra.mxu0 0.0
    %131 = vmatprep.subr.mxu0 0.0
    %132 = vmatpush2.msra.mxu0 0.0
    %133 = vmatprep.subr.mxu0 0.0
    %134 = vmatpush2.msra.mxu0 0.0
    %135 = vmatprep.subr.mxu0 0.0
    %136 = vmatpush2.msra.mxu0 0.0
    %137 = vmatprep.subr.mxu0 0.0
    %138 = vmatpush2.msra.mxu0 0.0
    %139 = vmatprep.subr.mxu0 0.0
    %140 = vmatpush2.msra.mxu0 0.0
    %141 = vmatprep.subr.mxu0 0.0
    %142 = vmatpush2.msra.mxu0 0.0
    %143 = vmatprep.mubr.f32.mxu0 0.0
    %144 = vmatmul.mubr.f32.gmra.mxu0 %v77
    %v145 = vpop.f32.mrf.mxu0
    %v146 = vadd.f32 %v73, %v145
    %v147 = vpop.f32.mrf.mxu0
    %148 = vdwg.mxu0
    %v149 = vmul.f32 %v146, 0.5
    %v150 = vmul.f32 %v146, 0.70710677
    %v151 = verf.f32.pop %v150
    %v152 = vadd.f32 %v151, 1.0
    %v153 = vmul.f32 %v149, %v152
    %v154 = vld [vmem:[#allocation7] sm:$0xff]
    %v155 = vld [vmem:[#allocation7 + $0x8] sm:$0xff]
    %v156 = vld [vmem:[#allocation7 + $0x10] sm:$0xff]
    %v157 = vld [vmem:[#allocation7 + $0x18] sm:$0xff]
    %v158 = vld [vmem:[#allocation7 + $0x20] sm:$0xff]
    %v159 = vld [vmem:[#allocation7 + $0x28] sm:$0xff]
    %v160 = vld [vmem:[#allocation7 + $0x30] sm:$0xff]
    %v161 = vld [vmem:[#allocation7 + $0x38] sm:$0xff]
    %v162 = vld [vmem:[#allocation7 + $0x40] sm:$0xff]
    %v163 = vld [vmem:[#allocation7 + $0x48] sm:$0xff]
    %v164 = vld [vmem:[#allocation7 + $0x50] sm:$0xff]
    %v165 = vld [vmem:[#allocation7 + $0x58] sm:$0xff]
    %v166 = vld [vmem:[#allocation7 + $0x60] sm:$0xff]
    %v167 = vld [vmem:[#allocation7 + $0x68] sm:$0xff]
    %v168 = vld [vmem:[#allocation7 + $0x70] sm:$0xff]
    %v169 = vld [vmem:[#allocation7 + $0x78] sm:$0xff]
    %v170 = vld [vmem:[#allocation7 + $0x80] sm:$0xff]
    %v171 = vld [vmem:[#allocation7 + $0x88] sm:$0xff]
    %v172 = vld [vmem:[#allocation7 + $0x90] sm:$0xff]
    %v173 = vld [vmem:[#allocation7 + $0x98] sm:$0xff]
    %v174 = vld [vmem:[#allocation7 + $0xa0] sm:$0xff]
    %v175 = vld [vmem:[#allocation7 + $0xa8] sm:$0xff]
    %v176 = vld [vmem:[#allocation7 + $0xb0] sm:$0xff]
    %v177 = vld [vmem:[#allocation7 + $0xb8] sm:$0xff]
    %v178 = vld [vmem:[#allocation7 + $0xc0] sm:$0xff]
    %v179 = vld [vmem:[#allocation7 + $0xc8] sm:$0xff]
    %v180 = vld [vmem:[#allocation7 + $0xd0] sm:$0xff]
    %v181 = vld [vmem:[#allocation7 + $0xd8] sm:$0xff]
    %v182 = vld [vmem:[#allocation7 + $0xe0] sm:$0xff]
    %v183 = vld [vmem:[#allocation7 + $0xe8] sm:$0xff]
    %v184 = vld [vmem:[#allocation7 + $0xf0] sm:$0xff]
    %v185 = vld [vmem:[#allocation7 + $0xf8] sm:$0xff]
    %v186 = vld [vmem:[%s4] sm:$0x3]
    %v188 = vlaneseq
    %v189 = vshrl.u32 %v188, 7
    %v190 = vsub.s32 0, %v189
    %v191 = vrot.slane %v186, %v190
    %v192 = vlaneseq
    %v193 = vshrl.u32 %v192, 7
    %v194 = vsub.s32 1, %v193
    %v195 = vrot.slane %v186, %v194
    %198 = vmatprep.subr.mxu0 %v185
    %199 = vmatpush1.msra.mxu0 %v184
    %200 = vmatprep.subr.mxu0 %v183
    %201 = vmatpush1.msra.mxu0 %v182
    %202 = vmatprep.subr.mxu0 %v181
    %203 = vmatpush1.msra.mxu0 %v180
    %204 = vmatprep.subr.mxu0 %v179
    %205 = vmatpush1.msra.mxu0 %v178
    %206 = vmatprep.subr.mxu0 %v177
    %207 = vmatpush1.msra.mxu0 %v176
    %208 = vmatprep.subr.mxu0 %v175
    %209 = vmatpush1.msra.mxu0 %v174
    %210 = vmatprep.subr.mxu0 %v173
    %211 = vmatpush1.msra.mxu0 %v172
    %212 = vmatprep.subr.mxu0 %v171
    %213 = vmatpush1.msra.mxu0 %v170
    %214 = vmatprep.subr.mxu0 %v169
    %215 = vmatpush1.msra.mxu0 %v168
    %216 = vmatprep.subr.mxu0 %v167
    %217 = vmatpush1.msra.mxu0 %v166
    %218 = vmatprep.subr.mxu0 %v165
    %219 = vmatpush1.msra.mxu0 %v164
    %220 = vmatprep.subr.mxu0 %v163
    %221 = vmatpush1.msra.mxu0 %v162
    %222 = vmatprep.subr.mxu0 %v161
    %223 = vmatpush1.msra.mxu0 %v160
    %224 = vmatprep.subr.mxu0 %v159
    %225 = vmatpush1.msra.mxu0 %v158
    %226 = vmatprep.subr.mxu0 %v157
    %227 = vmatpush1.msra.mxu0 %v156
    %228 = vmatprep.subr.mxu0 %v155
    %229 = vmatpush1.msra.mxu0 %v154
    %230 = vmatprep.subr.mxu0 0.0
    %231 = vmatpush2.msra.mxu0 0.0
    %232 = vmatprep.subr.mxu0 0.0
    %233 = vmatpush2.msra.mxu0 0.0
    %234 = vmatprep.subr.mxu0 0.0
    %235 = vmatpush2.msra.mxu0 0.0
    %236 = vmatprep.subr.mxu0 0.0
    %237 = vmatpush2.msra.mxu0 0.0
    %238 = vmatprep.subr.mxu0 0.0
    %239 = vmatpush2.msra.mxu0 0.0
    %240 = vmatprep.subr.mxu0 0.0
    %241 = vmatpush2.msra.mxu0 0.0
    %242 = vmatprep.subr.mxu0 0.0
    %243 = vmatpush2.msra.mxu0 0.0
    %244 = vmatprep.subr.mxu0 0.0
    %245 = vmatpush2.msra.mxu0 0.0
    %246 = vmatprep.subr.mxu0 0.0
    %247 = vmatpush2.msra.mxu0 0.0
    %248 = vmatprep.subr.mxu0 0.0
    %249 = vmatpush2.msra.mxu0 0.0
    %250 = vmatprep.subr.mxu0 0.0
    %251 = vmatpush2.msra.mxu0 0.0
    %252 = vmatprep.subr.mxu0 0.0
    %253 = vmatpush2.msra.mxu0 0.0
    %254 = vmatprep.subr.mxu0 0.0
    %255 = vmatpush2.msra.mxu0 0.0
    %256 = vmatprep.subr.mxu0 0.0
    %257 = vmatpush2.msra.mxu0 0.0
    %258 = vmatprep.subr.mxu0 0.0
    %259 = vmatpush2.msra.mxu0 0.0
    %260 = vmatprep.subr.mxu0 0.0
    %261 = vmatpush2.msra.mxu0 0.0
    %262 = vmatprep.mubr.f32.mxu0 0.0
    %263 = vmatmul.mubr.f32.gmra.mxu0 %v153
    %v264 = vpop.f32.mrf.mxu0
    %v265 = vadd.f32 %v191, %v264
    %v266 = vpop.f32.mrf.mxu0
    %v267 = vadd.f32 %v195, %v266
    %268 = vdwg.mxu0
    %269 = vst [vmem:[#allocation8] sm:$0xff] %v265
    %v270 = vmax.f32 %v267, 0.0
    %v271 = vand.u32 2147483647, %v267
    %v272 = vsub.f32 0.0, %v271
    %v273 = vmul.f32 %v272, 1.442695
    %v274 = vpow.pop %v273
    %v275 = vadd.f32 %v274, 1.0
    %v276 = vlog2.pop %v275
    %v277 = vmul.f32 %v276, 0.6931472
    %v278 = vmul.f32 -0.5, %v274
    %v279 = vadd.f32 %v278, 1.0
    %v280 = vmul.f32 %v279, %v274
    %v281 = vand.u32 2147483647, %v274
    %vm282 = vcmp.lt.f32.partialorder %v281, 0.0004427343
    %v283 = vsel %vm282, %v280, %v277
    %v284 = vadd.f32 %v270, %v283
    %v285 = vadd.f32 %v284, 1e-06
    %286 = vst [vmem:[#allocation9] sm:$0xff] %v285
    // Predicated region
    $region34: #{tpu_custom_call.1} parent=1 // pred_check
      _
    $region35: #{tpu_custom_call.1} parent=1 // pred_check_branch
      %288 = sbr.rel (0) target = $region37
    $region36: #{tpu_custom_call.1} parent=1 // pred_region
      %s290 = ssub.s32 128, 128
      %291 = vsyncadd [#allocation4], %s290
      %s293 = sshll.u32 [#allocation8], 4
      %s294 = int_to_ptr.vmem [resolvable:$true] %s293
      %296 = dma.vmem_to_hbm [thread:$0]  %s294, 128, %s5, [#allocation4]
    $region37: #{tpu_custom_call.1} parent=1 // pred_fallthru
      _
    // Predicated region
    $region38: #{tpu_custom_call.1} parent=1 // pred_check
      _
    $region39: #{tpu_custom_call.1} parent=1 // pred_check_branch
      %298 = sbr.rel (0) target = $region41
    $region40: #{tpu_custom_call.1} parent=1 // pred_region
      %s300 = ssub.s32 128, 128
      %301 = vsyncadd [#allocation10], %s300
      %s303 = sshll.u32 [#allocation9], 4
      %s304 = int_to_ptr.vmem [resolvable:$true] %s303
      %306 = dma.vmem_to_hbm [thread:$0]  %s304, 128, %s6, [#allocation10]
    $region41: #{tpu_custom_call.1} parent=1 // pred_fallthru
      _
    // Predicated region
    $region42: #{tpu_custom_call.1} parent=1 // pred_check
      _
    $region43: #{tpu_custom_call.1} parent=1 // pred_check_branch
      %308 = sbr.rel (0) target = $region45
    $region44: #{tpu_custom_call.1} parent=1 // pred_region
      %309 = dma.done [#allocation4], 128
    $region45: #{tpu_custom_call.1} parent=1 // pred_fallthru
      _
    // Predicated region
    $region46: #{tpu_custom_call.1} parent=1 // pred_check
      _
    $region47: #{tpu_custom_call.1} parent=1 // pred_check_branch
      %311 = sbr.rel (0) target = $region49
    $region48: #{tpu_custom_call.1} parent=1 // pred_region
      %312 = dma.done [#allocation10], 128
    $region49: #{tpu_custom_call.1} parent=1 // pred_fallthru
      _
    %313 = vsyncpa [#allocation3], 1
    %314 = vsyncpa [#allocation6], 1
    %315 = vsyncpa [#allocation4], 1
    %316 = vsyncpa [#allocation10], 1

</llo_original>
